<compile_context>
chip_gen: v6e
topology: v6e:2x2x1
jax: 0.10.0
libtpu: 0.0.40
codegen_flags: <defaults>
</compile_context>

<pallas_src>
import jax
import jax.numpy as jnp
from jax.experimental import pallas as pl
from jax.experimental.pallas import tpu as pltpu

B = 16            # total batch (pairs of left/right inputs)
D_META = 32       # synthetic meta_data feature dim
HIDDEN = 64       # feature_extractor.hidden_dimension
NUM_CLASSES = 2   # classifier output dim
LANE = 128        # lane-dense padded width for the classifier / logits path
NEG_INF = -1e30   # bias padding so padded lanes vanish under logsumexp


def fused_predictor_kernel(labels_ref, x_ref, w_blk_ref, b_blk_ref,
                           w_cls_ref, b_cls_ref,
                           loss_ref, logits_ref, hidden_ref):
    # ---- feature extractor (left & right fused via block-diagonal weight) ----
    # hidden = [tanh(meta_l @ w_fe + b_fe) | tanh(meta_r @ w_fe + b_fe)]
    hidden = jnp.tanh(
        jnp.dot(x_ref[...], w_blk_ref[...],
                preferred_element_type=jnp.float32) + b_blk_ref[...])    # [B, 2H]
    hidden_ref[...] = hidden                      # one full-width lane-dense store

    # ---- logits = classifier(hidden_reps), single [128,128] matmul ----
    logits = (jnp.dot(hidden, w_cls_ref[...], preferred_element_type=jnp.float32)
              + b_cls_ref[...])                   # [B, LANE]; cols >= 2 are -1e30
    logits_ref[...] = logits                      # lane-dense (128-wide) store

    # ---- CrossEntropyLoss(logits[:, :2], labels), mean over the batch ----
    # full-lane logsumexp: padded columns sit at ~-1e30 and underflow to 0.
    m = jnp.max(logits, axis=-1, keepdims=True)                          # [B, 1]
    lse = jnp.log(jnp.sum(jnp.exp(logits - m), axis=-1, keepdims=True)) + m
    lane = jax.lax.broadcasted_iota(jnp.int32, (B, LANE), 1)             # [B, LANE]
    onehot = lane == labels_ref[...]              # labels broadcast from [B, 1]
    picked = jnp.sum(jnp.where(onehot, logits, 0.0), axis=-1, keepdims=True)
    loss_ref[0, 0] = jnp.sum(lse - picked) * (1.0 / B)   # scalar -> SMEM


def prepare_params(w_fe, b_fe, w_cls, b_cls):
    """One-time (parameter-load-time) padding / block-diag construction.

    Kept OUT of the per-call jitted path: each pad / dynamic-update-slice is a
    separate XLA op whose cost is comparable to the fused kernel itself.
    """
    w_blk = (jnp.zeros((2 * D_META, 2 * HIDDEN), jnp.float32)
             .at[:D_META, :HIDDEN].set(w_fe)
             .at[D_META:, HIDDEN:].set(w_fe))                     # blockdiag(w_fe, w_fe)
    b_blk = jnp.concatenate([b_fe, b_fe], axis=1)                 # (1, 2H)
    w_cls_pad = (jnp.zeros((2 * HIDDEN, LANE), jnp.float32)
                 .at[:, :NUM_CLASSES].set(w_cls))                 # (2H, LANE)
    b_cls_pad = (jnp.full((1, LANE), NEG_INF, jnp.float32)
                 .at[:, :NUM_CLASSES].set(b_cls))                 # (1, LANE)
    return w_blk, b_blk, w_cls_pad, b_cls_pad


@jax.jit
def fused_predictor(meta_l, meta_r, labels, w_blk, b_blk, w_cls_pad, b_cls_pad):
    # Lane-axis concat so both feature-extractor passes are one matmul against
    # the block-diagonal weight (only per-call data op besides the kernel).
    x = jnp.concatenate([meta_l, meta_r], axis=1)                 # [B, 2*D_META]

    vmem = pl.BlockSpec(memory_space=pltpu.MemorySpace.VMEM)
    smem = pl.BlockSpec(memory_space=pltpu.MemorySpace.SMEM)
    out_shape = (
        jax.ShapeDtypeStruct((1, 1), jnp.float32),                # loss (SMEM)
        jax.ShapeDtypeStruct((B, LANE), jnp.float32),             # padded logits
        jax.ShapeDtypeStruct((B, 2 * HIDDEN), jnp.float32),       # hidden_reps
    )
    loss, logits_pad, hidden = pl.pallas_call(
        fused_predictor_kernel,
        out_shape=out_shape,
        in_specs=[vmem] * 6,
        out_specs=(smem, vmem, vmem),
    )(labels, x, w_blk, b_blk, w_cls_pad, b_cls_pad)

    return loss, logits_pad[:, :NUM_CLASSES], hidden


def reference(meta_l, meta_r, labels, w_fe, b_fe, w_cls, b_cls):
    left = jnp.tanh(meta_l @ w_fe + b_fe)
    right = jnp.tanh(meta_r @ w_fe + b_fe)
    hidden = jnp.concatenate([left, right], axis=1)
    logits = hidden @ w_cls + b_cls
    logp = jax.nn.log_softmax(logits, axis=1)
    loss = -jnp.mean(jnp.take_along_axis(logp, labels, axis=1))
    return loss, logits, hidden


if __name__ == "__main__":
    key = jax.random.PRNGKey(0)
    k1, k2, k3, k4, k5, k6, k7 = jax.random.split(key, 7)

    # deterministic inputs / parameters
    meta_l = jax.random.normal(k1, (B, D_META), dtype=jnp.float32)
    meta_r = jax.random.normal(k2, (B, D_META), dtype=jnp.float32)
    labels = jax.random.randint(k3, (B, 1), 0, NUM_CLASSES, dtype=jnp.int32)
    w_fe = 0.1 * jax.random.normal(k4, (D_META, HIDDEN), dtype=jnp.float32)
    b_fe = 0.1 * jax.random.normal(k5, (1, HIDDEN), dtype=jnp.float32)
    w_cls = 0.1 * jax.random.normal(k6, (2 * HIDDEN, NUM_CLASSES), dtype=jnp.float32)
    b_cls = 0.1 * jax.random.normal(k7, (1, NUM_CLASSES), dtype=jnp.float32)

    # one-time parameter preparation (not part of the per-call path)
    w_blk, b_blk, w_cls_pad, b_cls_pad = jax.block_until_ready(
        prepare_params(w_fe, b_fe, w_cls, b_cls))

    loss, logits, hidden = fused_predictor(
        meta_l, meta_r, labels, w_blk, b_blk, w_cls_pad, b_cls_pad)
    jax.block_until_ready((loss, logits, hidden))

    ref_loss, ref_logits, ref_hidden = reference(
        meta_l, meta_r, labels, w_fe, b_fe, w_cls, b_cls)
    assert jnp.allclose(loss[0, 0], ref_loss, atol=1e-4, rtol=1e-4)
    assert jnp.allclose(logits, ref_logits, atol=1e-4, rtol=1e-4)
    assert jnp.allclose(hidden, ref_hidden, atol=1e-4, rtol=1e-4)

    print("KERNEL_OK")
</pallas_src>

<mosaic_0001>
module attributes {stable_mosaic.version = 11 : i64} {
  func.func @fused_predictor_kernel(%arg0: memref<16x1xi32, #tpu.memory_space<vmem>>, %arg1: memref<16x64xf32, #tpu.memory_space<vmem>>, %arg2: memref<64x128xf32, #tpu.memory_space<vmem>>, %arg3: memref<1x128xf32, #tpu.memory_space<vmem>>, %arg4: memref<128x128xf32, #tpu.memory_space<vmem>>, %arg5: memref<1x128xf32, #tpu.memory_space<vmem>>, %arg6: memref<1x1xf32, #tpu.memory_space<smem>>, %arg7: memref<16x128xf32, #tpu.memory_space<vmem>>, %arg8: memref<16x128xf32, #tpu.memory_space<vmem>>) attributes {dimension_semantics = [], scalar_prefetch = 0 : i64, scratch_operands = 0 : i64, tpu.core_type = #tpu.core_type<tc>} {
    %c0 = arith.constant 0 : index
    %c0_0 = arith.constant 0 : index
    %0 = vector.load %arg1[%c0, %c0_0] : memref<16x64xf32, #tpu.memory_space<vmem>>, vector<16x64xf32>
    %c0_1 = arith.constant 0 : index
    %c0_2 = arith.constant 0 : index
    %1 = vector.load %arg2[%c0_1, %c0_2] : memref<64x128xf32, #tpu.memory_space<vmem>>, vector<64x128xf32>
    %cst = arith.constant dense<0.000000e+00> : vector<16x128xf32>
    %2 = tpu.matmul %0, %1, %cst {dimension_numbers = #tpu.dot_dimension_numbers<[1], [0], [0], [1], [0, 0, 1, 1], [], []>} : vector<16x64xf32>, vector<64x128xf32>, vector<16x128xf32> -> vector<16x128xf32>
    %c0_3 = arith.constant 0 : index
    %c0_4 = arith.constant 0 : index
    %3 = vector.load %arg3[%c0_3, %c0_4] : memref<1x128xf32, #tpu.memory_space<vmem>>, vector<1x128xf32>
    %4 = vector.broadcast %3 : vector<1x128xf32> to vector<16x128xf32>
    %5 = arith.addf %2, %4 : vector<16x128xf32>
    %6 = math.tanh %5 : vector<16x128xf32>
    %c0_5 = arith.constant 0 : index
    %c0_6 = arith.constant 0 : index
    %7 = vector.load %arg8[%c0_5, %c0_6] : memref<16x128xf32, #tpu.memory_space<vmem>>, vector<16x128xf32>
    tpu.vector_store %arg8[%c0_5, %c0_6], %6 {strides = array<i32>} : memref<16x128xf32, #tpu.memory_space<vmem>>, vector<16x128xf32>,
    %c0_7 = arith.constant 0 : index
    %c0_8 = arith.constant 0 : index
    %8 = vector.load %arg4[%c0_7, %c0_8] : memref<128x128xf32, #tpu.memory_space<vmem>>, vector<128x128xf32>
    %cst_9 = arith.constant dense<0.000000e+00> : vector<16x128xf32>
    %9 = tpu.matmul %6, %8, %cst_9 {dimension_numbers = #tpu.dot_dimension_numbers<[1], [0], [0], [1], [0, 0, 1, 1], [], []>} : vector<16x128xf32>, vector<128x128xf32>, vector<16x128xf32> -> vector<16x128xf32>
    %c0_10 = arith.constant 0 : index
    %c0_11 = arith.constant 0 : index
    %10 = vector.load %arg5[%c0_10, %c0_11] : memref<1x128xf32, #tpu.memory_space<vmem>>, vector<1x128xf32>
    %11 = vector.broadcast %10 : vector<1x128xf32> to vector<16x128xf32>
    %12 = arith.addf %9, %11 : vector<16x128xf32>
    %c0_12 = arith.constant 0 : index
    %c0_13 = arith.constant 0 : index
    %13 = vector.load %arg7[%c0_12, %c0_13] : memref<16x128xf32, #tpu.memory_space<vmem>>, vector<16x128xf32>
    tpu.vector_store %arg7[%c0_12, %c0_13], %12 {strides = array<i32>} : memref<16x128xf32, #tpu.memory_space<vmem>>, vector<16x128xf32>,
    %cst_14 = arith.constant dense<0xFF800000> : vector<16xf32>
    %14 = vector.multi_reduction <maximumf>, %12, %cst_14 [1] : vector<16x128xf32> to vector<16xf32>
    %15 = vector.shape_cast %14 : vector<16xf32> to vector<16x1xf32>
    %16 = vector.broadcast %15 : vector<16x1xf32> to vector<16x128xf32>
    %17 = arith.subf %12, %16 : vector<16x128xf32>
    %18 = math.exp %17 : vector<16x128xf32>
    %cst_15 = arith.constant dense<0.000000e+00> : vector<16xf32>
    %19 = vector.multi_reduction <add>, %18, %cst_15 [1] : vector<16x128xf32> to vector<16xf32>
    %20 = vector.shape_cast %19 : vector<16xf32> to vector<16x1xf32>
    %21 = math.log %20 : vector<16x1xf32>
    %22 = arith.addf %21, %15 : vector<16x1xf32>
    %23 = tpu.iota {dimensions = array<i32: 1>} : vector<16x128xi32>
    %c0_16 = arith.constant 0 : index
    %c0_17 = arith.constant 0 : index
    %24 = vector.load %arg0[%c0_16, %c0_17] : memref<16x1xi32, #tpu.memory_space<vmem>>, vector<16x1xi32>
    %25 = vector.broadcast %24 : vector<16x1xi32> to vector<16x128xi32>
    %26 = arith.cmpi eq, %23, %25 : vector<16x128xi32>
    %cst_18 = arith.constant 0.000000e+00 : f32
    %27 = vector.broadcast %cst_18 : f32 to vector<16x128xf32>
    %28 = arith.select %26, %12, %27 : vector<16x128xi1>, vector<16x128xf32>
    %cst_19 = arith.constant dense<0.000000e+00> : vector<16xf32>
    %29 = vector.multi_reduction <add>, %28, %cst_19 [1] : vector<16x128xf32> to vector<16xf32>
    %30 = vector.shape_cast %29 : vector<16xf32> to vector<16x1xf32>
    %31 = arith.subf %22, %30 : vector<16x1xf32>
    %32 = vector.shape_cast %31 : vector<16x1xf32> to vector<1x16x1xf32>
    %cst_20 = arith.constant dense<0.000000e+00> : vector<1xf32>
    %33 = vector.multi_reduction <add>, %32, %cst_20 [1, 2] : vector<1x16x1xf32> to vector<1xf32>
    %34 = vector.shape_cast %33 : vector<1xf32> to vector<1x1x1xf32>
    %35 = vector.extract %34[0, 0, 0] : f32 from vector<1x1x1xf32>
    %cst_21 = arith.constant 6.250000e-02 : f32
    %36 = arith.mulf %35, %cst_21 : f32
    %c0_22 = arith.constant 0 : index
    %c0_23 = arith.constant 0 : index
    %37 = memref.load %arg6[%c0_22, %c0_23] : memref<1x1xf32, #tpu.memory_space<smem>>
    memref.store %36, %arg6[%c0_22, %c0_23] : memref<1x1xf32, #tpu.memory_space<smem>>
    return
  }
}

</mosaic_0001>

<llo_original>
// kernel: fused_predictor.1
$region0: #{fused_predictor.1}
  #allocation0 [shape = 'u32[]', space=smem, size = 0x4, offset = 0x4, fixed_abs, tag = 'smem constant byte address 0x4 - core index']
  #allocation1 [shape = 'u32[144,128]{1,0:T(1,128)}', space=vmem, size = 0x12000, scoped, tag = 'internal scratch']
  %s0 = inlined_call_operand.vmem [shape: s32[16,1], index: 0, kind: input, shape index: {}]
  %s1 = inlined_call_operand.vmem [shape: f32[16,64], index: 1, kind: input, shape index: {}]
  %s2 = inlined_call_operand.vmem [shape: f32[64,128], index: 2, kind: input, shape index: {}]
  %s3 = inlined_call_operand.vmem [shape: f32[1,128], index: 3, kind: input, shape index: {}]
  %s4 = inlined_call_operand.hbm [shape: f32[128,128], index: 4, kind: input, shape index: {}]
  %s5 = inlined_call_operand.vmem [shape: f32[1,128], index: 5, kind: input, shape index: {}]
  %s6 = inlined_call_operand.hbm [shape: f32[1,1], index: 6, kind: output, shape index: {0}]
  %s7 = inlined_call_operand.vmem [shape: f32[16,128], index: 7, kind: output, shape index: {1}]
  %s8 = inlined_call_operand.hbm [shape: f32[16,128], index: 8, kind: output, shape index: {2}]
  %9 = xla_tuple %s6, %s7, %s8
  %s10 = sld [smem:[#allocation0]]
  $region54: #{fused_predictor.1} parent=0
    _
  %s12 = ssub.s32 1, %s10
  %s13 = scalar_select 0, %s12, %s10
  $region1: #{fused_predictor.1} parent=0
    #allocation2 [shape = 'u8[65536]{0}', space=vmem, size = 0x10000, scoped, tag = 'input window, operand 4, single buffered']
    #allocation3 [shape = 's32[1]{0}', space=sflag, size = 0x4, scoped, tag = 'scoped memory for fused_predictor.1']
    #allocation4 [shape = 's32[1]{0}', space=sflag, size = 0x4, scoped, tag = 'scoped memory for fused_predictor.1']
    #allocation5 [shape = 's32[1]{0}', space=sflag, size = 0x4, scoped, tag = 'scoped memory for fused_predictor.1']
    #allocation6 [shape = 'u8[512]{0}', space=smem, size = 0x200, scoped, tag = 'output window, operand 0, single buffered']
    #allocation7 [shape = 'u8[8192]{0}', space=vmem, size = 0x2000, scoped, tag = 'output window, operand 2, single buffered']
    %14 = vsyncpa [#allocation3], 0
    %15 = vsyncpa [#allocation5], 0
    %16 = vsyncpa [#allocation4], 0
    // Predicated region
    $region2: #{fused_predictor.1} parent=1 // pred_check
      _
    $region3: #{fused_predictor.1} parent=1 // pred_check_branch
      %18 = sbr.rel (0) target = $region5
    $region4: #{fused_predictor.1} parent=1 // pred_region
      _
    $region5: #{fused_predictor.1} parent=1 // pred_fallthru
      _
    // Predicated region
    $region6: #{fused_predictor.1} parent=1 // pred_check
      _
    $region7: #{fused_predictor.1} parent=1 // pred_check_branch
      %20 = sbr.rel (0) target = $region9
    $region8: #{fused_predictor.1} parent=1 // pred_region
      _
    $region9: #{fused_predictor.1} parent=1 // pred_fallthru
      _
    // Predicated region
    $region10: #{fused_predictor.1} parent=1 // pred_check
      _
    $region11: #{fused_predictor.1} parent=1 // pred_check_branch
      %22 = sbr.rel (0) target = $region13
    $region12: #{fused_predictor.1} parent=1 // pred_region
      _
    $region13: #{fused_predictor.1} parent=1 // pred_fallthru
      _
    // Predicated region
    $region14: #{fused_predictor.1} parent=1 // pred_check
      _
    $region15: #{fused_predictor.1} parent=1 // pred_check_branch
      %24 = sbr.rel (0) target = $region17
    $region16: #{fused_predictor.1} parent=1 // pred_region
      _
    $region17: #{fused_predictor.1} parent=1 // pred_fallthru
      _
    // Predicated region
    $region18: #{fused_predictor.1} parent=1 // pred_check
      _
    $region19: #{fused_predictor.1} parent=1 // pred_check_branch
      %26 = sbr.rel (0) target = $region21
    $region20: #{fused_predictor.1} parent=1 // pred_region
      %s28 = ssub.s32 2048, 2048
      %29 = vsyncadd [#allocation3], %s28
      %s30 = sshll.u32 [#allocation2], 4
      %s31 = int_to_ptr.vmem [resolvable:$true] %s30
      %36 = dma.hbm_to_vmem [thread:$0]  %s4, 2048, %s31, [#allocation3], 128, 128, 8
    $region21: #{fused_predictor.1} parent=1 // pred_fallthru
      _
    // Predicated region
    $region22: #{fused_predictor.1} parent=1 // pred_check
      _
    $region23: #{fused_predictor.1} parent=1 // pred_check_branch
      %38 = sbr.rel (0) target = $region25
    $region24: #{fused_predictor.1} parent=1 // pred_region
      _
    $region25: #{fused_predictor.1} parent=1 // pred_fallthru
      _
    // Predicated region
    $region26: #{fused_predictor.1} parent=1 // pred_check
      _
    $region27: #{fused_predictor.1} parent=1 // pred_check_branch
      %40 = sbr.rel (0) target = $region29
    $region28: #{fused_predictor.1} parent=1 // pred_region
      %41 = dma.done [#allocation3], 2048
    $region29: #{fused_predictor.1} parent=1 // pred_fallthru
      _
    %v42 = vld [vmem:[%s1] sm:$0xff]
    %v43 = vld [vmem:[%s1 + $0x8] sm:$0xff]
    %v44 = vld [vmem:[%s2] sm:$0xff]
    %v45 = vld [vmem:[%s2 + $0x8] sm:$0xff]
    %v46 = vld [vmem:[%s2 + $0x10] sm:$0xff]
    %v47 = vld [vmem:[%s2 + $0x18] sm:$0xff]
    %v48 = vld [vmem:[%s2 + $0x20] sm:$0xff]
    %v49 = vld [vmem:[%s2 + $0x28] sm:$0xff]
    %v50 = vld [vmem:[%s2 + $0x30] sm:$0xff]
    %v51 = vld [vmem:[%s2 + $0x38] sm:$0xff]
    %v52 = vld [vmem:[%s3] sm:$0x1]
    %v54 = vlaneseq
    %v55 = vshrl.u32 %v54, 7
    %v56 = vsub.s32 0, %v55
    %v57 = vrot.slane %v52, %v56
    %vm59 = vcmask 523264
    %v61 = vsel %vm59, %v42, 0
    %v64 = vsel %vm59, %v43, 0
    %66 = vmatprep.subr.mxu0 0.0
    %67 = vmatpush1.msra.mxu0 0.0
    %68 = vmatprep.subr.mxu0 0.0
    %69 = vmatpush1.msra.mxu0 0.0
    %70 = vmatprep.subr.mxu0 0.0
    %71 = vmatpush1.msra.mxu0 0.0
    %72 = vmatprep.subr.mxu0 0.0
    %73 = vmatpush1.msra.mxu0 0.0
    %74 = vmatprep.subr.mxu0 0.0
    %75 = vmatpush1.msra.mxu0 0.0
    %76 = vmatprep.subr.mxu0 0.0
    %77 = vmatpush1.msra.mxu0 0.0
    %78 = vmatprep.subr.mxu0 0.0
    %79 = vmatpush1.msra.mxu0 0.0
    %80 = vmatprep.subr.mxu0 0.0
    %81 = vmatpush1.msra.mxu0 0.0
    %82 = vmatprep.subr.mxu0 0.0
    %83 = vmatpush1.msra.mxu0 %v51
    %84 = vmatprep.subr.mxu0 0.0
    %85 = vmatpush1.msra.mxu0 %v50
    %86 = vmatprep.subr.mxu0 0.0
    %87 = vmatpush1.msra.mxu0 %v49
    %88 = vmatprep.subr.mxu0 0.0
    %89 = vmatpush1.msra.mxu0 %v48
    %90 = vmatprep.subr.mxu0 0.0
    %91 = vmatpush1.msra.mxu0 %v47
    %92 = vmatprep.subr.mxu0 0.0
    %93 = vmatpush1.msra.mxu0 %v46
    %94 = vmatprep.subr.mxu0 0.0
    %95 = vmatpush1.msra.mxu0 %v45
    %96 = vmatprep.subr.mxu0 0.0
    %97 = vmatpush1.msra.mxu0 %v44
    %98 = vmatprep.subr.mxu0 0.0
    %99 = vmatpush2.msra.mxu0 0.0
    %100 = vmatprep.subr.mxu0 0.0
    %101 = vmatpush2.msra.mxu0 0.0
    %102 = vmatprep.subr.mxu0 0.0
    %103 = vmatpush2.msra.mxu0 0.0
    %104 = vmatprep.subr.mxu0 0.0
    %105 = vmatpush2.msra.mxu0 0.0
    %106 = vmatprep.subr.mxu0 0.0
    %107 = vmatpush2.msra.mxu0 0.0
    %108 = vmatprep.subr.mxu0 0.0
    %109 = vmatpush2.msra.mxu0 0.0
    %110 = vmatprep.subr.mxu0 0.0
    %111 = vmatpush2.msra.mxu0 0.0
    %112 = vmatprep.subr.mxu0 0.0
    %113 = vmatpush2.msra.mxu0 0.0
    %114 = vmatprep.subr.mxu0 0.0
    %115 = vmatpush2.msra.mxu0 0.0
    %116 = vmatprep.subr.mxu0 0.0
    %117 = vmatpush2.msra.mxu0 0.0
    %118 = vmatprep.subr.mxu0 0.0
    %119 = vmatpush2.msra.mxu0 0.0
    %120 = vmatprep.subr.mxu0 0.0
    %121 = vmatpush2.msra.mxu0 0.0
    %122 = vmatprep.subr.mxu0 0.0
    %123 = vmatpush2.msra.mxu0 0.0
    %124 = vmatprep.subr.mxu0 0.0
    %125 = vmatpush2.msra.mxu0 0.0
    %126 = vmatprep.subr.mxu0 0.0
    %127 = vmatpush2.msra.mxu0 0.0
    %128 = vmatprep.subr.mxu0 0.0
    %129 = vmatpush2.msra.mxu0 0.0
    %130 = vmatprep.mubr.f32.mxu0 0.0
    %131 = vmatmul.mubr.f32.gmra.mxu0 %v61
    %v132 = vpop.f32.mrf.mxu0
    %v133 = vadd.f32 %v57, %v132
    %v134 = vpop.f32.mrf.mxu0
    %135 = vmatprep.mubr.f32.mxu0 0.0
    %136 = vmatmul.mubr.f32.gmra.mxu0 %v64
    %v137 = vpop.f32.mrf.mxu0
    %v138 = vadd.f32 %v57, %v137
    %v139 = vpop.f32.mrf.mxu0
    %140 = vdwg.mxu0
    %v141 = vtanh.pop %v133
    %v142 = vtanh.pop %v138
    %143 = vst [vmem:[#allocation7] sm:$0xff] %v141
    %144 = vst [vmem:[#allocation7 + $0x8] sm:$0xff] %v142
    %v145 = vld [vmem:[#allocation2] sm:$0xff]
    %v146 = vld [vmem:[#allocation2 + $0x8] sm:$0xff]
    %v147 = vld [vmem:[#allocation2 + $0x10] sm:$0xff]
    %v148 = vld [vmem:[#allocation2 + $0x18] sm:$0xff]
    %v149 = vld [vmem:[#allocation2 + $0x20] sm:$0xff]
    %v150 = vld [vmem:[#allocation2 + $0x28] sm:$0xff]
    %v151 = vld [vmem:[#allocation2 + $0x30] sm:$0xff]
    %v152 = vld [vmem:[#allocation2 + $0x38] sm:$0xff]
    %v153 = vld [vmem:[#allocation2 + $0x40] sm:$0xff]
    %v154 = vld [vmem:[#allocation2 + $0x48] sm:$0xff]
    %v155 = vld [vmem:[#allocation2 + $0x50] sm:$0xff]
    %v156 = vld [vmem:[#allocation2 + $0x58] sm:$0xff]
    %v157 = vld [vmem:[#allocation2 + $0x60] sm:$0xff]
    %v158 = vld [vmem:[#allocation2 + $0x68] sm:$0xff]
    %v159 = vld [vmem:[#allocation2 + $0x70] sm:$0xff]
    %v160 = vld [vmem:[#allocation2 + $0x78] sm:$0xff]
    %v161 = vld [vmem:[%s5] sm:$0x1]
    %v163 = vlaneseq
    %v164 = vshrl.u32 %v163, 7
    %v165 = vsub.s32 0, %v164
    %v166 = vrot.slane %v161, %v165
    %168 = vmatprep.subr.mxu0 0.0
    %169 = vmatpush1.msra.mxu0 %v160
    %170 = vmatprep.subr.mxu0 0.0
    %171 = vmatpush1.msra.mxu0 %v159
    %172 = vmatprep.subr.mxu0 0.0
    %173 = vmatpush1.msra.mxu0 %v158
    %174 = vmatprep.subr.mxu0 0.0
    %175 = vmatpush1.msra.mxu0 %v157
    %176 = vmatprep.subr.mxu0 0.0
    %177 = vmatpush1.msra.mxu0 %v156
    %178 = vmatprep.subr.mxu0 0.0
    %179 = vmatpush1.msra.mxu0 %v155
    %180 = vmatprep.subr.mxu0 0.0
    %181 = vmatpush1.msra.mxu0 %v154
    %182 = vmatprep.subr.mxu0 0.0
    %183 = vmatpush1.msra.mxu0 %v153
    %184 = vmatprep.subr.mxu0 0.0
    %185 = vmatpush1.msra.mxu0 %v152
    %186 = vmatprep.subr.mxu0 0.0
    %187 = vmatpush1.msra.mxu0 %v151
    %188 = vmatprep.subr.mxu0 0.0
    %189 = vmatpush1.msra.mxu0 %v150
    %190 = vmatprep.subr.mxu0 0.0
    %191 = vmatpush1.msra.mxu0 %v149
    %192 = vmatprep.subr.mxu0 0.0
    %193 = vmatpush1.msra.mxu0 %v148
    %194 = vmatprep.subr.mxu0 0.0
    %195 = vmatpush1.msra.mxu0 %v147
    %196 = vmatprep.subr.mxu0 0.0
    %197 = vmatpush1.msra.mxu0 %v146
    %198 = vmatprep.subr.mxu0 0.0
    %199 = vmatpush1.msra.mxu0 %v145
    %200 = vmatprep.subr.mxu0 0.0
    %201 = vmatpush2.msra.mxu0 0.0
    %202 = vmatprep.subr.mxu0 0.0
    %203 = vmatpush2.msra.mxu0 0.0
    %204 = vmatprep.subr.mxu0 0.0
    %205 = vmatpush2.msra.mxu0 0.0
    %206 = vmatprep.subr.mxu0 0.0
    %207 = vmatpush2.msra.mxu0 0.0
    %208 = vmatprep.subr.mxu0 0.0
    %209 = vmatpush2.msra.mxu0 0.0
    %210 = vmatprep.subr.mxu0 0.0
    %211 = vmatpush2.msra.mxu0 0.0
    %212 = vmatprep.subr.mxu0 0.0
    %213 = vmatpush2.msra.mxu0 0.0
    %214 = vmatprep.subr.mxu0 0.0
    %215 = vmatpush2.msra.mxu0 0.0
    %216 = vmatprep.subr.mxu0 0.0
    %217 = vmatpush2.msra.mxu0 0.0
    %218 = vmatprep.subr.mxu0 0.0
    %219 = vmatpush2.msra.mxu0 0.0
    %220 = vmatprep.subr.mxu0 0.0
    %221 = vmatpush2.msra.mxu0 0.0
    %222 = vmatprep.subr.mxu0 0.0
    %223 = vmatpush2.msra.mxu0 0.0
    %224 = vmatprep.subr.mxu0 0.0
    %225 = vmatpush2.msra.mxu0 0.0
    %226 = vmatprep.subr.mxu0 0.0
    %227 = vmatpush2.msra.mxu0 0.0
    %228 = vmatprep.subr.mxu0 0.0
    %229 = vmatpush2.msra.mxu0 0.0
    %230 = vmatprep.subr.mxu0 0.0
    %231 = vmatpush2.msra.mxu0 0.0
    %232 = vmatprep.mubr.f32.mxu0 0.0
    %233 = vmatmul.mubr.f32.gmra.mxu0 %v141
    %v234 = vpop.f32.mrf.mxu0
    %v235 = vadd.f32 %v166, %v234
    %v236 = vpop.f32.mrf.mxu0
    %237 = vmatprep.mubr.f32.mxu0 0.0
    %238 = vmatmul.mubr.f32.gmra.mxu0 %v142
    %v239 = vpop.f32.mrf.mxu0
    %v240 = vadd.f32 %v166, %v239
    %v241 = vpop.f32.mrf.mxu0
    %242 = vdwg.mxu0
    %243 = vst [vmem:[%s7] sm:$0xff] %v235
    %244 = vst [vmem:[%s7 + $0x8] sm:$0xff] %v240
    %245 = vmax.xlane.f32.xlu0 %v235
    %v246 = vpop.xlane.xlu0 %245
    %247 = vmax.xlane.f32.xlu0 %v240
    %v248 = vpop.xlane.xlu0 %247
    %v249 = vsub.f32 %v235, %v246
    %v250 = vsub.f32 %v240, %v248
    %v251 = vmul.f32 %v249, 1.442695
    %v252 = vpow.pop %v251
    %v253 = vmul.f32 %v250, 1.442695
    %v254 = vpow.pop %v253
    %255 = vadd.xlane.f32.xlu0 %v252
    %v256 = vpop.xlane.xlu0 %255
    %257 = vadd.xlane.f32.xlu0 %v254
    %v258 = vpop.xlane.xlu0 %257
    %v259 = vlog2.pop %v256
    %v260 = vmul.f32 %v259, 0.6931472
    %v261 = vlog2.pop %v258
    %v262 = vmul.f32 %v261, 0.6931472
    %v263 = vadd.f32 %v260, %v246
    %v264 = vadd.f32 %v262, %v248
    %v265 = vlaneseq
    %v266 = vand.u32 %v265, 127
    %v267 = vld [vmem:[%s0] sm:$0xff]
    %v268 = vld [vmem:[%s0 + $0x8] sm:$0xff]
    %269 = vset.pattern.permute.xlu0 0
    %270 = vperm.xlu0 %269, %v267
    %v271 = vpop.permute.xlu0 %270
    %272 = vset.pattern.permute.xlu0 0
    %273 = vperm.xlu0 %272, %v268
    %v274 = vpop.permute.xlu0 %273
    %vm275 = vcmp.eq.s32.totalorder %v266, %v271
    %vm276 = vcmp.eq.s32.totalorder %v266, %v274
    %v277 = vsel %vm275, %v235, 0.0
    %v278 = vsel %vm276, %v240, 0.0
    %279 = vadd.xlane.f32.xlu0 %v277
    %v280 = vpop.xlane.xlu0 %279
    %281 = vadd.xlane.f32.xlu0 %v278
    %v282 = vpop.xlane.xlu0 %281
    %v283 = vsub.f32 %v263, %v280
    %v284 = vsub.f32 %v264, %v282
    %vm285 = vcmask 7168
    %v286 = vsel %vm285, %v283, 0.0
    %v287 = vsel %vm285, %v284, 0.0
    %v288 = vadd.f32 %v286, %v287
    %289 = vadd.xlane.f32.xlu0 %v288
    %v290 = vpop.xlane.xlu0 %289
    %v291 = vrot.slane %v290, 4
    %v292 = vadd.f32 %v290, %v291
    %v293 = vrot.slane %v292, 2
    %v294 = vadd.f32 %v292, %v293
    %v295 = vrot.slane %v294, 1
    %v296 = vadd.f32 %v294, %v295
    %s297 = vtos %v296
    %s298 = smul.f32 %s297, 0.0625
    %s299 = scalar_lea.smem [#allocation6], 0
    %300 = sst [smem:[%s299]] %s298
    // Predicated region
    $region30: #{fused_predictor.1} parent=1 // pred_check
      _
    $region31: #{fused_predictor.1} parent=1 // pred_check_branch
      %302 = sbr.rel (0) target = $region33
    $region32: #{fused_predictor.1} parent=1 // pred_region
      %s304 = ssub.s32 16, 16
      %305 = vsyncadd [#allocation5], %s304
      %308 = dma.smem_to_hbm [#allocation6], 16, %s6, [#allocation5]
    $region33: #{fused_predictor.1} parent=1 // pred_fallthru
      _
    // Predicated region
    $region34: #{fused_predictor.1} parent=1 // pred_check
      _
    $region35: #{fused_predictor.1} parent=1 // pred_check_branch
      %310 = sbr.rel (0) target = $region37
    $region36: #{fused_predictor.1} parent=1 // pred_region
      _
    $region37: #{fused_predictor.1} parent=1 // pred_fallthru
      _
    // Predicated region
    $region38: #{fused_predictor.1} parent=1 // pred_check
      _
    $region39: #{fused_predictor.1} parent=1 // pred_check_branch
      %312 = sbr.rel (0) target = $region41
    $region40: #{fused_predictor.1} parent=1 // pred_region
      %s314 = ssub.s32 256, 256
      %315 = vsyncadd [#allocation4], %s314
      %s316 = sshll.u32 [#allocation7], 4
      %s317 = int_to_ptr.vmem [resolvable:$true] %s316
      %322 = dma.vmem_to_hbm [thread:$0]  %s317, 256, %s8, [#allocation4], 128, 128, 8
    $region41: #{fused_predictor.1} parent=1 // pred_fallthru
      _
    // Predicated region
    $region42: #{fused_predictor.1} parent=1 // pred_check
      _
    $region43: #{fused_predictor.1} parent=1 // pred_check_branch
      %324 = sbr.rel (0) target = $region45
    $region44: #{fused_predictor.1} parent=1 // pred_region
      %325 = dma.done [#allocation5], 16
    $region45: #{fused_predictor.1} parent=1 // pred_fallthru
      _
    // Predicated region
    $region46: #{fused_predictor.1} parent=1 // pred_check
      _
    $region47: #{fused_predictor.1} parent=1 // pred_check_branch
      %327 = sbr.rel (0) target = $region49
    $region48: #{fused_predictor.1} parent=1 // pred_region
      _
    $region49: #{fused_predictor.1} parent=1 // pred_fallthru
      _
    // Predicated region
    $region50: #{fused_predictor.1} parent=1 // pred_check
      _
    $region51: #{fused_predictor.1} parent=1 // pred_check_branch
      %329 = sbr.rel (0) target = $region53
    $region52: #{fused_predictor.1} parent=1 // pred_region
      %330 = dma.done [#allocation4], 256
    $region53: #{fused_predictor.1} parent=1 // pred_fallthru
      _
    %331 = sfence
    %332 = vsyncpa [#allocation3], 1
    %333 = vsyncpa [#allocation4], 1
    %334 = vsyncpa [#allocation5], 1

</llo_original>
